<compile_context>
chip_gen: v6e
topology: v6e:2x2x1
jax: 0.10.0
libtpu: 0.0.40
codegen_flags: <defaults>
</compile_context>

<pallas_src>
import jax
import jax.numpy as jnp
from jax.experimental import pallas as pl
from jax.experimental.pallas import tpu as pltpu


def detector_kernel(x_ref, w_ref, b_ref, labels_ref, masks_ref,
                    logits_ref, loss_ref, num_ref, den_ref):
    """One (batch, S-tile) grid step: linear head + masked CE accumulation.

    x_ref:      (1, TS, H)  f32
    w_ref:      (H, C)      f32
    b_ref:      (1, C)      f32
    labels_ref: (1, TS, 1)  i32   (-100 == ignore)
    masks_ref:  (1, TS, 1)  f32
    logits_ref: (1, TS, C)  f32  (out)
    loss_ref:   (1, 1, 1)   f32  (out; written on the last S tile)
    num_ref/den_ref: (1, 1) f32 VMEM scratch (loss numerator / mask denominator)
    """
    s = pl.program_id(1)
    n_s = pl.num_programs(1)
    TS, H = x_ref.shape[1], x_ref.shape[2]
    C = w_ref.shape[1]

    @pl.when(s == 0)
    def _():
        num_ref[...] = jnp.zeros_like(num_ref)
        den_ref[...] = jnp.zeros_like(den_ref)

    # Single 2D MXU matmul (collapse the size-1 batch dim of the block).
    x2d = x_ref[...].reshape(TS, H)
    logits2d = jnp.dot(x2d, w_ref[...],
                       preferred_element_type=jnp.float32) + b_ref[...]   # (TS, C)
    logits_ref[...] = logits2d.reshape(1, TS, C)

    # Lean, numerically stable cross-entropy:
    #   nll = m + log(sum(exp(logits - m))) - logits[label]
    m = jnp.max(logits2d, axis=-1, keepdims=True)                          # (TS, 1)
    lse = jnp.log(jnp.sum(jnp.exp(logits2d - m), axis=-1, keepdims=True))  # (TS, 1)

    labels = labels_ref[...].reshape(TS, 1)                                # (TS, 1) i32
    class_ids = jax.lax.broadcasted_iota(jnp.int32, (TS, C), 1)
    label_logit = jnp.sum(jnp.where(class_ids == labels, logits2d, 0.0),
                          axis=-1, keepdims=True)                          # (TS, 1)
    valid = (labels != -100).astype(jnp.float32)                           # (TS, 1)
    token_loss = (m + lse - label_logit) * valid                           # (TS, 1)

    num_ref[...] += jnp.sum(token_loss, axis=0, keepdims=True)             # (1, 1)
    den_ref[...] += jnp.sum(masks_ref[...].reshape(TS, 1),
                            axis=0, keepdims=True)                         # (1, 1)

    @pl.when(s == n_s - 1)
    def _():
        # Matches PyTorch semantics: no guard against masks.sum(-1) == 0
        # (an all-padding row produces inf/NaN in the reference too).
        loss_ref[...] = (num_ref[...] / den_ref[...]).reshape(1, 1, 1)


def _choose_seq_tile(S, H, max_block_bytes=4 << 20):
    """Largest multiple-of-8 divisor of S whose (TS, H) f32 x-block stays
    within max_block_bytes (~1-4 MiB is the mem-bound sweet spot)."""
    cap = max(8, max_block_bytes // (H * 4))
    if S <= cap:
        return S
    best = None
    t = 8
    while t <= min(S, cap):
        if S % t == 0:
            best = t
        t += 8
    return best if best is not None else S


def detector_forward(encoder_output, masks, target_labels, weight, bias, *, ts=None):
    """encoder_output: (B, S, H) f32; masks: (B, S) f32; target_labels: (B, S) i32;
       weight: (C, H) f32 (nn.Linear layout); bias: (C,) f32."""
    B, S, H = encoder_output.shape
    C = weight.shape[0]

    if ts is None:
        ts = _choose_seq_tile(S, H)
    assert S % ts == 0, f"seq tile {ts} must divide S={S}"
    n_s = S // ts

    w_hc = jnp.transpose(weight)                              # (H, C)
    b = bias.reshape(1, C)
    labels3 = target_labels.reshape(B, S, 1).astype(jnp.int32)
    masks3 = masks.reshape(B, S, 1).astype(jnp.float32)

    logits, loss = pl.pallas_call(
        detector_kernel,
        out_shape=(
            jax.ShapeDtypeStruct((B, S, C), jnp.float32),
            jax.ShapeDtypeStruct((B, 1, 1), jnp.float32),
        ),
        grid_spec=pltpu.PrefetchScalarGridSpec(
            num_scalar_prefetch=0,
            grid=(B, n_s),
            in_specs=[
                pl.BlockSpec((1, ts, H), lambda b_, s_: (b_, s_, 0)),   # x
                pl.BlockSpec((H, C), lambda b_, s_: (0, 0)),            # weight
                pl.BlockSpec((1, C), lambda b_, s_: (0, 0)),            # bias
                pl.BlockSpec((1, ts, 1), lambda b_, s_: (b_, s_, 0)),   # labels
                pl.BlockSpec((1, ts, 1), lambda b_, s_: (b_, s_, 0)),   # masks
            ],
            out_specs=[
                pl.BlockSpec((1, ts, C), lambda b_, s_: (b_, s_, 0)),   # logits
                pl.BlockSpec((1, 1, 1), lambda b_, s_: (b_, 0, 0)),     # loss (resident over s)
            ],
            scratch_shapes=[
                pltpu.VMEM((1, 1), jnp.float32),   # loss numerator
                pltpu.VMEM((1, 1), jnp.float32),   # mask denominator
            ],
        ),
        compiler_params=pltpu.CompilerParams(
            dimension_semantics=("parallel", "arbitrary")),
    )(encoder_output, w_hc, b, labels3, masks3)

    return logits, loss[:, 0, 0]


def detector_forward_ref(encoder_output, masks, target_labels, weight, bias):
    """Pure-JAX reference for validation."""
    logits = jnp.einsum('bsh,ch->bsc', encoder_output, weight) + bias
    logprobs = jax.nn.log_softmax(logits, axis=-1)
    labels = target_labels
    safe = jnp.where(labels == -100, 0, labels)
    nll = -jnp.take_along_axis(logprobs, safe[..., None], axis=-1)[..., 0]
    nll = jnp.where(labels == -100, 0.0, nll)
    loss = nll.sum(-1) / masks.sum(-1)
    return logits, loss


if __name__ == "__main__":
    B, S, H, C = 2, 256, 128, 2
    TS = 64   # force a multi-tile grid (2, 4) to exercise the accumulator path

    key = jax.random.PRNGKey(0)
    k_x, k_w, k_b, k_lbl = jax.random.split(key, 4)

    encoder_output = jax.random.normal(k_x, (B, S, H), dtype=jnp.float32)

    # Deterministic "nn.Linear(hidden_size, output_dim)" parameters.
    bound = 1.0 / jnp.sqrt(H)
    weight = jax.random.uniform(k_w, (C, H), minval=-bound, maxval=bound,
                                dtype=jnp.float32)
    bias = jax.random.uniform(k_b, (C,), minval=-bound, maxval=bound,
                              dtype=jnp.float32)

    # masks: batch 0 fully valid, batch 1 has 173 valid tokens.
    lengths = jnp.array([S, 173], dtype=jnp.int32)
    pos = jnp.arange(S, dtype=jnp.int32)[None, :]
    masks_bool = pos < lengths[:, None]
    masks = masks_bool.astype(jnp.float32)

    raw_labels = jax.random.randint(k_lbl, (B, S), 0, C, dtype=jnp.int32)
    target_labels = jnp.where(masks_bool, raw_labels, -100).astype(jnp.int32)

    logits, loss = detector_forward(encoder_output, masks, target_labels,
                                    weight, bias, ts=TS)
    jax.block_until_ready((logits, loss))

    logits_ref, loss_ref = detector_forward_ref(encoder_output, masks,
                                                target_labels, weight, bias)

    assert jnp.allclose(logits, logits_ref, atol=1e-5, rtol=1e-5), "logits mismatch"
    assert jnp.allclose(loss, loss_ref, atol=1e-5, rtol=1e-5), "loss mismatch"

    print("KERNEL_OK")
</pallas_src>

<mosaic_0001>
module attributes {stable_mosaic.version = 11 : i64} {
  func.func @detector_kernel(%arg0: i32, %arg1: i32, %arg2: memref<1x64x128xf32, #tpu.memory_space<vmem>>, %arg3: memref<128x2xf32, #tpu.memory_space<vmem>>, %arg4: memref<1x2xf32, #tpu.memory_space<vmem>>, %arg5: memref<1x64x1xi32, #tpu.memory_space<vmem>>, %arg6: memref<1x64x1xf32, #tpu.memory_space<vmem>>, %arg7: memref<1x64x2xf32, #tpu.memory_space<vmem>>, %arg8: memref<1x1x1xf32, #tpu.memory_space<vmem>>, %arg9: memref<1x1xf32, #tpu.memory_space<vmem>>, %arg10: memref<1x1xf32, #tpu.memory_space<vmem>>) attributes {dimension_semantics = [#tpu.dimension_semantics<parallel>, #tpu.dimension_semantics<arbitrary>], iteration_bounds = array<i64: 2, 4>, scalar_prefetch = 0 : i64, scratch_operands = 2 : i64, tpu.core_type = #tpu.core_type<tc>, window_params = [{transform_indices = @transform_0, window_bounds = array<i64: 1, 64, 128>}, {pipeline_mode = #tpu.pipeline_mode<synchronous>, transform_indices = @transform_1, window_bounds = array<i64: 128, 2>}, {pipeline_mode = #tpu.pipeline_mode<synchronous>, transform_indices = @transform_2, window_bounds = array<i64: 1, 2>}, {transform_indices = @transform_3, window_bounds = array<i64: 1, 64, 1>}, {transform_indices = @transform_4, window_bounds = array<i64: 1, 64, 1>}, {transform_indices = @transform_5, window_bounds = array<i64: 1, 64, 2>}, {transform_indices = @transform_6, window_bounds = array<i64: 1, 1, 1>}]} {
    %c0_i32 = arith.constant 0 : i32
    %0 = arith.cmpi eq, %arg1, %c0_i32 : i32
    %1 = arith.extui %0 : i1 to i32
    %c0_i32_0 = arith.constant 0 : i32
    %2 = arith.cmpi ne, %1, %c0_i32_0 : i32
    scf.if %2 {
      %cst_31 = arith.constant 0.000000e+00 : f32
      %51 = vector.broadcast %cst_31 : f32 to vector<1x1xf32>
      %c0_32 = arith.constant 0 : index
      %c0_33 = arith.constant 0 : index
      %52 = vector.load %arg9[%c0_32, %c0_33] : memref<1x1xf32, #tpu.memory_space<vmem>>, vector<1x1xf32>
      tpu.vector_store %arg9[%c0_32, %c0_33], %51 {strides = array<i32>} : memref<1x1xf32, #tpu.memory_space<vmem>>, vector<1x1xf32>,
      %cst_34 = arith.constant 0.000000e+00 : f32
      %53 = vector.broadcast %cst_34 : f32 to vector<1x1xf32>
      %c0_35 = arith.constant 0 : index
      %c0_36 = arith.constant 0 : index
      %54 = vector.load %arg10[%c0_35, %c0_36] : memref<1x1xf32, #tpu.memory_space<vmem>>, vector<1x1xf32>
      tpu.vector_store %arg10[%c0_35, %c0_36], %53 {strides = array<i32>} : memref<1x1xf32, #tpu.memory_space<vmem>>, vector<1x1xf32>,
    } else {
    }
    %c0 = arith.constant 0 : index
    %c0_1 = arith.constant 0 : index
    %c0_2 = arith.constant 0 : index
    %3 = vector.load %arg2[%c0, %c0_1, %c0_2] : memref<1x64x128xf32, #tpu.memory_space<vmem>>, vector<1x64x128xf32>
    %4 = vector.shape_cast %3 : vector<1x64x128xf32> to vector<64x128xf32>
    %c0_3 = arith.constant 0 : index
    %c0_4 = arith.constant 0 : index
    %5 = vector.load %arg3[%c0_3, %c0_4] : memref<128x2xf32, #tpu.memory_space<vmem>>, vector<128x2xf32>
    %cst = arith.constant dense<0.000000e+00> : vector<64x2xf32>
    %6 = tpu.matmul %4, %5, %cst {dimension_numbers = #tpu.dot_dimension_numbers<[1], [0], [0], [1], [0, 0, 1, 1], [], []>} : vector<64x128xf32>, vector<128x2xf32>, vector<64x2xf32> -> vector<64x2xf32>
    %c0_5 = arith.constant 0 : index
    %c0_6 = arith.constant 0 : index
    %7 = vector.load %arg4[%c0_5, %c0_6] : memref<1x2xf32, #tpu.memory_space<vmem>>, vector<1x2xf32>
    %8 = vector.broadcast %7 : vector<1x2xf32> to vector<64x2xf32>
    %9 = arith.addf %6, %8 : vector<64x2xf32>
    %10 = vector.shape_cast %9 : vector<64x2xf32> to vector<1x64x2xf32>
    %c0_7 = arith.constant 0 : index
    %c0_8 = arith.constant 0 : index
    %c0_9 = arith.constant 0 : index
    %11 = vector.load %arg7[%c0_7, %c0_8, %c0_9] : memref<1x64x2xf32, #tpu.memory_space<vmem>>, vector<1x64x2xf32>
    tpu.vector_store %arg7[%c0_7, %c0_8, %c0_9], %10 {strides = array<i32>} : memref<1x64x2xf32, #tpu.memory_space<vmem>>, vector<1x64x2xf32>,
    %cst_10 = arith.constant dense<0xFF800000> : vector<64xf32>
    %12 = vector.multi_reduction <maximumf>, %9, %cst_10 [1] : vector<64x2xf32> to vector<64xf32>
    %13 = vector.shape_cast %12 : vector<64xf32> to vector<64x1xf32>
    %14 = vector.broadcast %13 : vector<64x1xf32> to vector<64x2xf32>
    %15 = arith.subf %9, %14 : vector<64x2xf32>
    %16 = math.exp %15 : vector<64x2xf32>
    %cst_11 = arith.constant dense<0.000000e+00> : vector<64xf32>
    %17 = vector.multi_reduction <add>, %16, %cst_11 [1] : vector<64x2xf32> to vector<64xf32>
    %18 = vector.shape_cast %17 : vector<64xf32> to vector<64x1xf32>
    %19 = math.log %18 : vector<64x1xf32>
    %c0_12 = arith.constant 0 : index
    %c0_13 = arith.constant 0 : index
    %c0_14 = arith.constant 0 : index
    %20 = vector.load %arg5[%c0_12, %c0_13, %c0_14] : memref<1x64x1xi32, #tpu.memory_space<vmem>>, vector<1x64x1xi32>
    %21 = vector.shape_cast %20 : vector<1x64x1xi32> to vector<64x1xi32>
    %22 = tpu.iota {dimensions = array<i32: 1>} : vector<64x2xi32>
    %23 = vector.broadcast %21 : vector<64x1xi32> to vector<64x2xi32>
    %24 = arith.cmpi eq, %22, %23 : vector<64x2xi32>
    %cst_15 = arith.constant 0.000000e+00 : f32
    %25 = vector.broadcast %cst_15 : f32 to vector<64x2xf32>
    %26 = arith.select %24, %9, %25 : vector<64x2xi1>, vector<64x2xf32>
    %cst_16 = arith.constant dense<0.000000e+00> : vector<64xf32>
    %27 = vector.multi_reduction <add>, %26, %cst_16 [1] : vector<64x2xf32> to vector<64xf32>
    %28 = vector.shape_cast %27 : vector<64xf32> to vector<64x1xf32>
    %c-100_i32 = arith.constant -100 : i32
    %29 = vector.broadcast %c-100_i32 : i32 to vector<64x1xi32>
    %30 = arith.cmpi ne, %21, %29 : vector<64x1xi32>
    %31 = arith.extui %30 : vector<64x1xi1> to vector<64x1xi32>
    %32 = arith.sitofp %31 : vector<64x1xi32> to vector<64x1xf32>
    %33 = arith.addf %13, %19 : vector<64x1xf32>
    %34 = arith.subf %33, %28 : vector<64x1xf32>
    %35 = arith.mulf %34, %32 : vector<64x1xf32>
    %c0_17 = arith.constant 0 : index
    %c0_18 = arith.constant 0 : index
    %36 = vector.load %arg9[%c0_17, %c0_18] : memref<1x1xf32, #tpu.memory_space<vmem>>, vector<1x1xf32>
    %cst_19 = arith.constant dense<0.000000e+00> : vector<1xf32>
    %37 = vector.multi_reduction <add>, %35, %cst_19 [0] : vector<64x1xf32> to vector<1xf32>
    %38 = vector.shape_cast %37 : vector<1xf32> to vector<1x1xf32>
    %39 = arith.addf %36, %38 : vector<1x1xf32>
    %c0_20 = arith.constant 0 : index
    %c0_21 = arith.constant 0 : index
    %40 = vector.load %arg9[%c0_20, %c0_21] : memref<1x1xf32, #tpu.memory_space<vmem>>, vector<1x1xf32>
    tpu.vector_store %arg9[%c0_20, %c0_21], %39 {strides = array<i32>} : memref<1x1xf32, #tpu.memory_space<vmem>>, vector<1x1xf32>,
    %c0_22 = arith.constant 0 : index
    %c0_23 = arith.constant 0 : index
    %41 = vector.load %arg10[%c0_22, %c0_23] : memref<1x1xf32, #tpu.memory_space<vmem>>, vector<1x1xf32>
    %c0_24 = arith.constant 0 : index
    %c0_25 = arith.constant 0 : index
    %c0_26 = arith.constant 0 : index
    %42 = vector.load %arg6[%c0_24, %c0_25, %c0_26] : memref<1x64x1xf32, #tpu.memory_space<vmem>>, vector<1x64x1xf32>
    %43 = vector.shape_cast %42 : vector<1x64x1xf32> to vector<64x1xf32>
    %cst_27 = arith.constant dense<0.000000e+00> : vector<1xf32>
    %44 = vector.multi_reduction <add>, %43, %cst_27 [0] : vector<64x1xf32> to vector<1xf32>
    %45 = vector.shape_cast %44 : vector<1xf32> to vector<1x1xf32>
    %46 = arith.addf %41, %45 : vector<1x1xf32>
    %c0_28 = arith.constant 0 : index
    %c0_29 = arith.constant 0 : index
    %47 = vector.load %arg10[%c0_28, %c0_29] : memref<1x1xf32, #tpu.memory_space<vmem>>, vector<1x1xf32>
    tpu.vector_store %arg10[%c0_28, %c0_29], %46 {strides = array<i32>} : memref<1x1xf32, #tpu.memory_space<vmem>>, vector<1x1xf32>,
    %c3_i32 = arith.constant 3 : i32
    %48 = arith.cmpi eq, %arg1, %c3_i32 : i32
    %49 = arith.extui %48 : i1 to i32
    %c0_i32_30 = arith.constant 0 : i32
    %50 = arith.cmpi ne, %49, %c0_i32_30 : i32
    scf.if %50 {
      %c0_31 = arith.constant 0 : index
      %c0_32 = arith.constant 0 : index
      %51 = vector.load %arg9[%c0_31, %c0_32] : memref<1x1xf32, #tpu.memory_space<vmem>>, vector<1x1xf32>
      %c0_33 = arith.constant 0 : index
      %c0_34 = arith.constant 0 : index
      %52 = vector.load %arg10[%c0_33, %c0_34] : memref<1x1xf32, #tpu.memory_space<vmem>>, vector<1x1xf32>
      %53 = arith.divf %51, %52 : vector<1x1xf32>
      %54 = vector.shape_cast %53 : vector<1x1xf32> to vector<1x1x1xf32>
      %c0_35 = arith.constant 0 : index
      %c0_36 = arith.constant 0 : index
      %c0_37 = arith.constant 0 : index
      %55 = vector.load %arg8[%c0_35, %c0_36, %c0_37] : memref<1x1x1xf32, #tpu.memory_space<vmem>>, vector<1x1x1xf32>
      tpu.vector_store %arg8[%c0_35, %c0_36, %c0_37], %54 {strides = array<i32>} : memref<1x1x1xf32, #tpu.memory_space<vmem>>, vector<1x1x1xf32>,
    } else {
    }
    return
  }
  func.func @transform_0(%arg0: i32, %arg1: i32) -> (i32, i32, i32) {
    %c0_i32 = arith.constant 0 : i32
    %c0_i32_0 = arith.constant 0 : i32
    return %arg0, %arg1, %c0_i32 : i32, i32, i32
  }
  func.func @transform_1(%arg0: i32, %arg1: i32) -> (i32, i32) {
    %c0_i32 = arith.constant 0 : i32
    %c0_i32_0 = arith.constant 0 : i32
    %c0_i32_1 = arith.constant 0 : i32
    return %c0_i32, %c0_i32_0 : i32, i32
  }
  func.func @transform_2(%arg0: i32, %arg1: i32) -> (i32, i32) {
    %c0_i32 = arith.constant 0 : i32
    %c0_i32_0 = arith.constant 0 : i32
    %c0_i32_1 = arith.constant 0 : i32
    return %c0_i32, %c0_i32_0 : i32, i32
  }
  func.func @transform_3(%arg0: i32, %arg1: i32) -> (i32, i32, i32) {
    %c0_i32 = arith.constant 0 : i32
    %c0_i32_0 = arith.constant 0 : i32
    return %arg0, %arg1, %c0_i32 : i32, i32, i32
  }
  func.func @transform_4(%arg0: i32, %arg1: i32) -> (i32, i32, i32) {
    %c0_i32 = arith.constant 0 : i32
    %c0_i32_0 = arith.constant 0 : i32
    return %arg0, %arg1, %c0_i32 : i32, i32, i32
  }
  func.func @transform_5(%arg0: i32, %arg1: i32) -> (i32, i32, i32) {
    %c0_i32 = arith.constant 0 : i32
    %c0_i32_0 = arith.constant 0 : i32
    return %arg0, %arg1, %c0_i32 : i32, i32, i32
  }
  func.func @transform_6(%arg0: i32, %arg1: i32) -> (i32, i32, i32) {
    %c0_i32 = arith.constant 0 : i32
    %c0_i32_0 = arith.constant 0 : i32
    %c0_i32_1 = arith.constant 0 : i32
    return %arg0, %c0_i32, %c0_i32_0 : i32, i32, i32
  }
}

</mosaic_0001>

<llo_original>
// kernel: tpu_custom_call.1
$region0: #{tpu_custom_call.1}
  #allocation0 [shape = 'u32[]', space=smem, size = 0x4, offset = 0x4, fixed_abs, tag = 'smem constant byte address 0x4 - core index']
  #allocation1 [shape = 'u32[144,128]{1,0:T(1,128)}', space=vmem, size = 0x12000, scoped, tag = 'internal scratch']
  #allocation2 [shape = 'f32[1,1]{1,0:T(1,128)}', space=vmem, size = 0x200, scoped, tag = 'scratch operand']
  #allocation3 [shape = 'f32[1,1]{1,0:T(1,128)}', space=vmem, size = 0x200, scoped, tag = 'scratch operand']
  %s0 = inlined_call_operand.vmem [shape: f32[2,256,128], index: 0, kind: input, shape index: {}]
  %s1 = inlined_call_operand.vmem [shape: f32[128,2], index: 1, kind: input, shape index: {}]
  %s2 = inlined_call_operand.vmem [shape: f32[1,2], index: 2, kind: input, shape index: {}]
  %s3 = inlined_call_operand.vmem [shape: s32[2,256,1], index: 3, kind: input, shape index: {}]
  %s4 = inlined_call_operand.vmem [shape: f32[2,256,1], index: 4, kind: input, shape index: {}]
  %s5 = inlined_call_operand.vmem [shape: f32[2,256,2], index: 5, kind: output, shape index: {0}]
  %s6 = inlined_call_operand.vmem [shape: f32[2,1,1], index: 6, kind: output, shape index: {1}]
  %7 = xla_tuple %s5, %s6
  %s8 = sld [smem:[#allocation0]]
  $region69: #{tpu_custom_call.1} parent=0
    _
  %s10 = ssub.s32 1, %s8
  %s11 = scalar_select 0, %s10, %s8
  loop: start=0, step=1, limit=10
  $region2: #{tpu_custom_call.1} parent=0 // loop_pre_header
    _
  $region3: #{tpu_custom_call.1} parent=0 // loop_header
    %s13 = sphi 0, %s17
    %p14 = scmp.ge.s32.totalorder %s13, 10
    %s20 = sphi 0, %s32
    %s21 = sphi 0, %s28
    %s22 = sphi 0, %s20
    %s23 = sphi 0, %s21
    %s24 = sphi 0, %s22
    %s25 = sphi 0, %s23
    %s37 = sphi 0, %s39
    %s40 = sphi 0, %s37
    %s41 = sphi 0, %s40
    %s57 = sphi 0, %s41
    %s61 = sphi 0, %s61
    %s63 = sphi 0, %s61
    %s64 = sphi 0, %s63
    %s78 = sphi 0, %s64
    %s82 = sphi 0, %s82
    %s84 = sphi 0, %s82
    %s85 = sphi 0, %s84
    %s99 = sphi 0, %s85
    %s107 = sphi 0, %s109
    %s110 = sphi 0, %s107
    %s111 = sphi 0, %s110
    %s127 = sphi 0, %s111
    %s135 = sphi 0, %s137
    %s138 = sphi 0, %s135
    %s139 = sphi 0, %s138
    %s155 = sphi 0, %s139
    %s163 = sphi 0, %s165
    %s166 = sphi 0, %s163
    %s167 = sphi 0, %s166
    %s183 = sphi 0, %s167
    %s189 = sphi 0, %s191
    %s192 = sphi 0, %s189
    %s193 = sphi 0, %s192
    %s209 = sphi 0, %s193
  $region4: #{tpu_custom_call.1} parent=0 // loop_header_branch
    %16 = sbr.rel (%p14) target = $region8
  $region5: #{tpu_custom_call.1} parent=0 // loop_body
    %s18 = ssub.s32 %s13, 1
    %s19 = ssub.s32 %s13, 2
    %s26 = sadd.s32 1, %s21
    %p27 = scmp.ge.s32.totalorder %s26, 4
    %s28 = scalar_select %p27, 0, %s26
    %s29 = sadd.s32 1, %s20
    %s30 = scalar_select %p27, %s29, %s20
    %p31 = scmp.ge.s32.totalorder %s30, 2
    %s32 = scalar_select %p31, 0, %s30
    %s33 = ssub.s32 %s20, %s32
    %s34 = ssub.s32 %s21, %s28
    %s35 = sor.u32 %s33, %s34
    %p36 = scmp.eq.s32.totalorder %s35, 0
    %s38 = sadd.s32 %s37, 1
    %s39 = scalar_select %p36, %s37, %s38
    %p42 = pneg %p36
    %p43 = scmp.eq.s32.totalorder %s13, 7
    %p44 = por %p42, %p43
    %p45 = scmp.ne.s32.totalorder %s37, %s40
    %p46 = scmp.eq.s32.totalorder %s13, 0
    %p47 = por %p45, %p46
    %p48 = scmp.ne.s32.totalorder %s37, %s40
    %p49 = scmp.eq.s32.totalorder %s18, 7
    %p50 = por %p48, %p49
    %p51 = scmp.ne.s32.totalorder %s40, %s41
    %p52 = scmp.eq.s32.totalorder %s18, 0
    %p53 = por %p51, %p52
    %p54 = scmp.ne.s32.totalorder %s40, %s41
    %p55 = scmp.eq.s32.totalorder %s19, 7
    %p56 = por %p54, %p55
    %p58 = scmp.ne.s32.totalorder %s41, %s57
    %p59 = scmp.eq.s32.totalorder %s19, 0
    %p60 = por %p58, %p59
    %s62 = sadd.s32 %s61, 1
    %p65 = scmp.eq.s32.totalorder %s13, 7
    %p66 = scmp.ne.s32.totalorder %s61, %s63
    %p67 = scmp.eq.s32.totalorder %s13, 0
    %p68 = por %p66, %p67
    %p69 = scmp.ne.s32.totalorder %s61, %s63
    %p70 = scmp.eq.s32.totalorder %s18, 7
    %p71 = por %p69, %p70
    %p72 = scmp.ne.s32.totalorder %s63, %s64
    %p73 = scmp.eq.s32.totalorder %s18, 0
    %p74 = por %p72, %p73
    %p75 = scmp.ne.s32.totalorder %s63, %s64
    %p76 = scmp.eq.s32.totalorder %s19, 7
    %p77 = por %p75, %p76
    %p79 = scmp.ne.s32.totalorder %s64, %s78
    %p80 = scmp.eq.s32.totalorder %s19, 0
    %p81 = por %p79, %p80
    %s83 = sadd.s32 %s82, 1
    %p86 = scmp.eq.s32.totalorder %s13, 7
    %p87 = scmp.ne.s32.totalorder %s82, %s84
    %p88 = scmp.eq.s32.totalorder %s13, 0
    %p89 = por %p87, %p88
    %p90 = scmp.ne.s32.totalorder %s82, %s84
    %p91 = scmp.eq.s32.totalorder %s18, 7
    %p92 = por %p90, %p91
    %p93 = scmp.ne.s32.totalorder %s84, %s85
    %p94 = scmp.eq.s32.totalorder %s18, 0
    %p95 = por %p93, %p94
    %p96 = scmp.ne.s32.totalorder %s84, %s85
    %p97 = scmp.eq.s32.totalorder %s19, 7
    %p98 = por %p96, %p97
    %p100 = scmp.ne.s32.totalorder %s85, %s99
    %p101 = scmp.eq.s32.totalorder %s19, 0
    %p102 = por %p100, %p101
    %s103 = ssub.s32 %s20, %s32
    %s104 = ssub.s32 %s21, %s28
    %s105 = sor.u32 %s103, %s104
    %p106 = scmp.eq.s32.totalorder %s105, 0
    %s108 = sadd.s32 %s107, 1
    %s109 = scalar_select %p106, %s107, %s108
    %p112 = pneg %p106
    %p113 = scmp.eq.s32.totalorder %s13, 7
    %p114 = por %p112, %p113
    %p115 = scmp.ne.s32.totalorder %s107, %s110
    %p116 = scmp.eq.s32.totalorder %s13, 0
    %p117 = por %p115, %p116
    %p118 = scmp.ne.s32.totalorder %s107, %s110
    %p119 = scmp.eq.s32.totalorder %s18, 7
    %p120 = por %p118, %p119
    %p121 = scmp.ne.s32.totalorder %s110, %s111
    %p122 = scmp.eq.s32.totalorder %s18, 0
    %p123 = por %p121, %p122
    %p124 = scmp.ne.s32.totalorder %s110, %s111
    %p125 = scmp.eq.s32.totalorder %s19, 7
    %p126 = por %p124, %p125
    %p128 = scmp.ne.s32.totalorder %s111, %s127
    %p129 = scmp.eq.s32.totalorder %s19, 0
    %p130 = por %p128, %p129
    %s131 = ssub.s32 %s20, %s32
    %s132 = ssub.s32 %s21, %s28
    %s133 = sor.u32 %s131, %s132
    %p134 = scmp.eq.s32.totalorder %s133, 0
    %s136 = sadd.s32 %s135, 1
    %s137 = scalar_select %p134, %s135, %s136
    %p140 = pneg %p134
    %p141 = scmp.eq.s32.totalorder %s13, 7
    %p142 = por %p140, %p141
    %p143 = scmp.ne.s32.totalorder %s135, %s138
    %p144 = scmp.eq.s32.totalorder %s13, 0
    %p145 = por %p143, %p144
    %p146 = scmp.ne.s32.totalorder %s135, %s138
    %p147 = scmp.eq.s32.totalorder %s18, 7
    %p148 = por %p146, %p147
    %p149 = scmp.ne.s32.totalorder %s138, %s139
    %p150 = scmp.eq.s32.totalorder %s18, 0
    %p151 = por %p149, %p150
    %p152 = scmp.ne.s32.totalorder %s138, %s139
    %p153 = scmp.eq.s32.totalorder %s19, 7
    %p154 = por %p152, %p153
    %p156 = scmp.ne.s32.totalorder %s139, %s155
    %p157 = scmp.eq.s32.totalorder %s19, 0
    %p158 = por %p156, %p157
    %s159 = ssub.s32 %s20, %s32
    %s160 = ssub.s32 %s21, %s28
    %s161 = sor.u32 %s159, %s160
    %p162 = scmp.eq.s32.totalorder %s161, 0
    %s164 = sadd.s32 %s163, 1
    %s165 = scalar_select %p162, %s163, %s164
    %p168 = pneg %p162
    %p169 = scmp.eq.s32.totalorder %s13, 7
    %p170 = por %p168, %p169
    %p171 = scmp.ne.s32.totalorder %s163, %s166
    %p172 = scmp.eq.s32.totalorder %s13, 0
    %p173 = por %p171, %p172
    %p174 = scmp.ne.s32.totalorder %s163, %s166
    %p175 = scmp.eq.s32.totalorder %s18, 7
    %p176 = por %p174, %p175
    %p177 = scmp.ne.s32.totalorder %s166, %s167
    %p178 = scmp.eq.s32.totalorder %s18, 0
    %p179 = por %p177, %p178
    %p180 = scmp.ne.s32.totalorder %s166, %s167
    %p181 = scmp.eq.s32.totalorder %s19, 7
    %p182 = por %p180, %p181
    %p184 = scmp.ne.s32.totalorder %s167, %s183
    %p185 = scmp.eq.s32.totalorder %s19, 0
    %p186 = por %p184, %p185
    %s187 = ssub.s32 %s20, %s32
    %p188 = scmp.eq.s32.totalorder %s187, 0
    %s190 = sadd.s32 %s189, 1
    %s191 = scalar_select %p188, %s189, %s190
    %p194 = pneg %p188
    %p195 = scmp.eq.s32.totalorder %s13, 7
    %p196 = por %p194, %p195
    %p197 = scmp.ne.s32.totalorder %s189, %s192
    %p198 = scmp.eq.s32.totalorder %s13, 0
    %p199 = por %p197, %p198
    %p200 = scmp.ne.s32.totalorder %s189, %s192
    %p201 = scmp.eq.s32.totalorder %s18, 7
    %p202 = por %p200, %p201
    %p203 = scmp.ne.s32.totalorder %s192, %s193
    %p204 = scmp.eq.s32.totalorder %s18, 0
    %p205 = por %p203, %p204
    %p206 = scmp.ne.s32.totalorder %s192, %s193
    %p207 = scmp.eq.s32.totalorder %s19, 7
    %p208 = por %p206, %p207
    %p210 = scmp.ne.s32.totalorder %s193, %s209
    %p211 = scmp.eq.s32.totalorder %s19, 0
    %p212 = por %p210, %p211
    %p213 = scmp.le.s32.totalorder 1, %s13
    %p214 = scmp.lt.s32.totalorder %s13, 9
    %p215 = pnand %p213, %p214
    %p216 = pneg %p215
    // Predicated region
    $region9: #{tpu_custom_call.1} parent=5 // pred_check
      _
    $region10: #{tpu_custom_call.1} parent=5 // pred_check_branch
      %218 = sbr.rel (%p215) target = $region12
    $region11: #{tpu_custom_call.1} parent=5 // pred_region
      %s219 = ssub.s32 %s13, 1
      // Predicated region
      $region13: #{tpu_custom_call.1} parent=11 // pred_check
        %p220 = pneg %p74
      $region14: #{tpu_custom_call.1} parent=11 // pred_check_branch
        %222 = sbr.rel (%p220) target = $region16
      $region15: #{tpu_custom_call.1} parent=11 // pred_region
        _
      $region16: #{tpu_custom_call.1} parent=11 // pred_fallthru
        _
      // Predicated region
      $region17: #{tpu_custom_call.1} parent=11 // pred_check
        %p223 = pneg %p95
      $region18: #{tpu_custom_call.1} parent=11 // pred_check_branch
        %225 = sbr.rel (%p223) target = $region20
      $region19: #{tpu_custom_call.1} parent=11 // pred_region
        _
      $region20: #{tpu_custom_call.1} parent=11 // pred_fallthru
        _
    $region12: #{tpu_custom_call.1} parent=5 // pred_fallthru
      _
    %p226 = scmp.lt.s32.totalorder %s13, 8
    // Predicated region
    $region21: #{tpu_custom_call.1} parent=5 // pred_check
      %p227 = pneg %p226
    $region22: #{tpu_custom_call.1} parent=5 // pred_check_branch
      %229 = sbr.rel (%p227) target = $region24
    $region23: #{tpu_custom_call.1} parent=5 // pred_region
      // Predicated region
      $region25: #{tpu_custom_call.1} parent=23 // pred_check
        %p230 = pneg %p47
      $region26: #{tpu_custom_call.1} parent=23 // pred_check_branch
        %232 = sbr.rel (%p230) target = $region28
      $region27: #{tpu_custom_call.1} parent=23 // pred_region
        %s233 = smul.u32 8, %s21
        %p234 = scmp.lt.s32.totalorder %s20, 1
        %s235 = scalar_select %p234, %s20, 1
        %p236 = scmp.lt.s32.totalorder %s233, 31
        %s237 = scalar_select %p236, %s233, 31
        %s238 = smul.addr %s235, 32
        %s239 = sadd.s32 %s237, %s238
        %s240 = smul.addr %s239, 8
        %s241 = scalar_lea.vmem %s0, %s240
        %s242 = smul.u32 8, %s21
      $region28: #{tpu_custom_call.1} parent=23 // pred_fallthru
        _
      // Predicated region
      $region29: #{tpu_custom_call.1} parent=23 // pred_check
        %p243 = pneg %p117
      $region30: #{tpu_custom_call.1} parent=23 // pred_check_branch
        %245 = sbr.rel (%p243) target = $region32
      $region31: #{tpu_custom_call.1} parent=23 // pred_region
        %s246 = smul.u32 8, %s21
        %p247 = scmp.lt.s32.totalorder %s20, 1
        %s248 = scalar_select %p247, %s20, 1
        %p249 = scmp.lt.s32.totalorder %s246, 31
        %s250 = scalar_select %p249, %s246, 31
        %s251 = smul.addr %s248, 32
        %s252 = sadd.s32 %s250, %s251
        %s253 = smul.addr %s252, 8
        %s254 = scalar_lea.vmem %s3, %s253
        %s255 = smul.u32 8, %s21
      $region32: #{tpu_custom_call.1} parent=23 // pred_fallthru
        _
      // Predicated region
      $region33: #{tpu_custom_call.1} parent=23 // pred_check
        %p256 = pneg %p145
      $region34: #{tpu_custom_call.1} parent=23 // pred_check_branch
        %258 = sbr.rel (%p256) target = $region36
      $region35: #{tpu_custom_call.1} parent=23 // pred_region
        %s259 = smul.u32 8, %s21
        %p260 = scmp.lt.s32.totalorder %s20, 1
        %s261 = scalar_select %p260, %s20, 1
        %p262 = scmp.lt.s32.totalorder %s259, 31
        %s263 = scalar_select %p262, %s259, 31
        %s264 = smul.addr %s261, 32
        %s265 = sadd.s32 %s263, %s264
        %s266 = smul.addr %s265, 8
        %s267 = scalar_lea.vmem %s4, %s266
        %s268 = smul.u32 8, %s21
      $region36: #{tpu_custom_call.1} parent=23 // pred_fallthru
        _
    $region24: #{tpu_custom_call.1} parent=5 // pred_fallthru
      _
    %p269 = scmp.le.s32.totalorder 1, %s13
    %p270 = scmp.lt.s32.totalorder %s13, 9
    %p271 = pnand %p269, %p270
    %p272 = pneg %p271
    // Predicated region
    $region37: #{tpu_custom_call.1} parent=5 // pred_check
      _
    $region38: #{tpu_custom_call.1} parent=5 // pred_check_branch
      %274 = sbr.rel (%p271) target = $region40
    $region39: #{tpu_custom_call.1} parent=5 // pred_region
      %s275 = ssub.s32 %s13, 1
      %s276 = smul.u32 8, %s23
      %p277 = scmp.lt.s32.totalorder %s22, 1
      %s278 = scalar_select %p277, %s22, 1
      %p279 = scmp.lt.s32.totalorder %s276, 31
      %s280 = scalar_select %p279, %s276, 31
      %s281 = smul.addr %s278, 32
      %s282 = sadd.s32 %s280, %s281
      %s283 = smul.addr %s282, 8
      %s284 = scalar_lea.vmem %s0, %s283
      %p285 = pneg %p53
      %p286 = pneg %p50
      %p287 = pneg %p74
      %p288 = pneg %p71
      %p289 = pneg %p95
      %p290 = pneg %p92
      %s291 = smul.u32 8, %s23
      %p292 = scmp.lt.s32.totalorder %s22, 1
      %s293 = scalar_select %p292, %s22, 1
      %p294 = scmp.lt.s32.totalorder %s291, 31
      %s295 = scalar_select %p294, %s291, 31
      %s296 = smul.addr %s293, 32
      %s297 = sadd.s32 %s295, %s296
      %s298 = smul.addr %s297, 8
      %s299 = scalar_lea.vmem %s3, %s298
      %p300 = pneg %p123
      %p301 = pneg %p120
      %s302 = smul.u32 8, %s23
      %p303 = scmp.lt.s32.totalorder %s22, 1
      %s304 = scalar_select %p303, %s22, 1
      %p305 = scmp.lt.s32.totalorder %s302, 31
      %s306 = scalar_select %p305, %s302, 31
      %s307 = smul.addr %s304, 32
      %s308 = sadd.s32 %s306, %s307
      %s309 = smul.addr %s308, 8
      %s310 = scalar_lea.vmem %s4, %s309
      %p311 = pneg %p151
      %p312 = pneg %p148
      %p313 = pneg %p179
      %p314 = pneg %p176
      %s315 = smul.u32 8, %s23
      %p316 = scmp.lt.s32.totalorder %s22, 1
      %s317 = scalar_select %p316, %s22, 1
      %p318 = scmp.lt.s32.totalorder %s315, 31
      %s319 = scalar_select %p318, %s315, 31
      %s320 = smul.addr %s317, 32
      %s321 = sadd.s32 %s319, %s320
      %s322 = smul.addr %s321, 8
      %s323 = scalar_lea.vmem %s5, %s322
      %p324 = pneg %p205
      %p325 = pneg %p202
      %p326 = scmp.lt.s32.totalorder %s22, 1
      %s327 = scalar_select %p326, %s22, 1
      %s328 = scalar_lea.vmem %s6, %s327
      %s329 = smul.u32 8, %s23
      %p330 = scmp.lt.s32.totalorder %s22, 1
      %s331 = scalar_select %p330, %s22, 1
      %p332 = scmp.lt.s32.totalorder %s329, 31
      %s333 = scalar_select %p332, %s329, 31
      %s334 = smul.addr %s331, 32
      %s335 = sadd.s32 %s333, %s334
      %s336 = smul.addr %s335, 8
      %s337 = scalar_lea.vmem %s0, %s336
      %s338 = smul.u32 8, %s23
      %s339 = smul.u32 8, %s23
      %p340 = scmp.lt.s32.totalorder %s22, 1
      %s341 = scalar_select %p340, %s22, 1
      %p342 = scmp.lt.s32.totalorder %s339, 31
      %s343 = scalar_select %p342, %s339, 31
      %s344 = smul.addr %s341, 32
      %s345 = sadd.s32 %s343, %s344
      %s346 = smul.addr %s345, 8
      %s347 = scalar_lea.vmem %s3, %s346
      %s348 = smul.u32 8, %s23
      %s349 = smul.u32 8, %s23
      %p350 = scmp.lt.s32.totalorder %s22, 1
      %s351 = scalar_select %p350, %s22, 1
      %p352 = scmp.lt.s32.totalorder %s349, 31
      %s353 = scalar_select %p352, %s349, 31
      %s354 = smul.addr %s351, 32
      %s355 = sadd.s32 %s353, %s354
      %s356 = smul.addr %s355, 8
      %s357 = scalar_lea.vmem %s4, %s356
      %s358 = smul.u32 8, %s23
      %s359 = smul.u32 8, %s23
      %p360 = scmp.lt.s32.totalorder %s22, 1
      %s361 = scalar_select %p360, %s22, 1
      %p362 = scmp.lt.s32.totalorder %s359, 31
      %s363 = scalar_select %p362, %s359, 31
      %s364 = smul.addr %s361, 32
      %s365 = sadd.s32 %s363, %s364
      %s366 = smul.addr %s365, 8
      %s367 = scalar_lea.vmem %s5, %s366
      %s368 = smul.u32 8, %s23
      %p369 = scmp.lt.s32.totalorder %s22, 1
      %s370 = scalar_select %p369, %s22, 1
      %s371 = scalar_lea.vmem %s6, %s370
      %p372 = scmp.eq.s32.totalorder %s23, 0
      // Predicated region
      $region41: #{tpu_custom_call.1} parent=39 // pred_check
        %p373 = pneg %p372
      $region42: #{tpu_custom_call.1} parent=39 // pred_check_branch
        %375 = sbr.rel (%p373) target = $region44
      $region43: #{tpu_custom_call.1} parent=39 // pred_region
        %vm376 = vcmask 0
        %377 = vst.msk [vmem:[#allocation2] sm:$0x1] %vm376, 0.0
        %378 = vst.msk [vmem:[#allocation3] sm:$0x1] %vm376, 0.0
      $region44: #{tpu_custom_call.1} parent=39 // pred_fallthru
        _
      %v379 = vld [vmem:[%s337] sm:$0xff]
      %v380 = vld [vmem:[%s337 + $0x8] sm:$0xff]
      %v381 = vld [vmem:[%s337 + $0x10] sm:$0xff]
      %v382 = vld [vmem:[%s337 + $0x18] sm:$0xff]
      %v383 = vld [vmem:[%s337 + $0x20] sm:$0xff]
      %v384 = vld [vmem:[%s337 + $0x28] sm:$0xff]
      %v385 = vld [vmem:[%s337 + $0x30] sm:$0xff]
      %v386 = vld [vmem:[%s337 + $0x38] sm:$0xff]
      %v387 = vld [vmem:[%s1] sm:$0xff]
      %v388 = vld [vmem:[%s1 + $0x8] sm:$0xff]
      %v389 = vld [vmem:[%s1 + $0x10] sm:$0xff]
      %v390 = vld [vmem:[%s1 + $0x18] sm:$0xff]
      %v391 = vld [vmem:[%s1 + $0x20] sm:$0xff]
      %v392 = vld [vmem:[%s1 + $0x28] sm:$0xff]
      %v393 = vld [vmem:[%s1 + $0x30] sm:$0xff]
      %v394 = vld [vmem:[%s1 + $0x38] sm:$0xff]
      %v395 = vld [vmem:[%s1 + $0x40] sm:$0xff]
      %v396 = vld [vmem:[%s1 + $0x48] sm:$0xff]
      %v397 = vld [vmem:[%s1 + $0x50] sm:$0xff]
      %v398 = vld [vmem:[%s1 + $0x58] sm:$0xff]
      %v399 = vld [vmem:[%s1 + $0x60] sm:$0xff]
      %v400 = vld [vmem:[%s1 + $0x68] sm:$0xff]
      %v401 = vld [vmem:[%s1 + $0x70] sm:$0xff]
      %v402 = vld [vmem:[%s1 + $0x78] sm:$0xff]
      %v403 = vld [vmem:[%s2] sm:$0x1]
      %v405 = vlaneseq
      %v406 = vshrl.u32 %v405, 7
      %v407 = vsub.s32 0, %v406
      %v408 = vrot.slane %v403, %v407
      %410 = vmatprep.subr.mxu0 0.0
      %411 = vmatpush1.msra.mxu0 %v402
      %412 = vmatprep.subr.mxu0 0.0
      %413 = vmatpush1.msra.mxu0 %v401
      %414 = vmatprep.subr.mxu0 0.0
      %415 = vmatpush1.msra.mxu0 %v400
      %416 = vmatprep.subr.mxu0 0.0
      %417 = vmatpush1.msra.mxu0 %v399
      %418 = vmatprep.subr.mxu0 0.0
      %419 = vmatpush1.msra.mxu0 %v398
      %420 = vmatprep.subr.mxu0 0.0
      %421 = vmatpush1.msra.mxu0 %v397
      %422 = vmatprep.subr.mxu0 0.0
      %423 = vmatpush1.msra.mxu0 %v396
      %424 = vmatprep.subr.mxu0 0.0
      %425 = vmatpush1.msra.mxu0 %v395
      %426 = vmatprep.subr.mxu0 0.0
      %427 = vmatpush1.msra.mxu0 %v394
      %428 = vmatprep.subr.mxu0 0.0
      %429 = vmatpush1.msra.mxu0 %v393
      %430 = vmatprep.subr.mxu0 0.0
      %431 = vmatpush1.msra.mxu0 %v392
      %432 = vmatprep.subr.mxu0 0.0
      %433 = vmatpush1.msra.mxu0 %v391
      %434 = vmatprep.subr.mxu0 0.0
      %435 = vmatpush1.msra.mxu0 %v390
      %436 = vmatprep.subr.mxu0 0.0
      %437 = vmatpush1.msra.mxu0 %v389
      %438 = vmatprep.subr.mxu0 0.0
      %439 = vmatpush1.msra.mxu0 %v388
      %440 = vmatprep.subr.mxu0 0.0
      %441 = vmatpush1.msra.mxu0 %v387
      %442 = vmatprep.subr.mxu0 0.0
      %443 = vmatpush2.msra.mxu0 0.0
      %444 = vmatprep.subr.mxu0 0.0
      %445 = vmatpush2.msra.mxu0 0.0
      %446 = vmatprep.subr.mxu0 0.0
      %447 = vmatpush2.msra.mxu0 0.0
      %448 = vmatprep.subr.mxu0 0.0
      %449 = vmatpush2.msra.mxu0 0.0
      %450 = vmatprep.subr.mxu0 0.0
      %451 = vmatpush2.msra.mxu0 0.0
      %452 = vmatprep.subr.mxu0 0.0
      %453 = vmatpush2.msra.mxu0 0.0
      %454 = vmatprep.subr.mxu0 0.0
      %455 = vmatpush2.msra.mxu0 0.0
      %456 = vmatprep.subr.mxu0 0.0
      %457 = vmatpush2.msra.mxu0 0.0
      %458 = vmatprep.subr.mxu0 0.0
      %459 = vmatpush2.msra.mxu0 0.0
      %460 = vmatprep.subr.mxu0 0.0
      %461 = vmatpush2.msra.mxu0 0.0
      %462 = vmatprep.subr.mxu0 0.0
      %463 = vmatpush2.msra.mxu0 0.0
      %464 = vmatprep.subr.mxu0 0.0
      %465 = vmatpush2.msra.mxu0 0.0
      %466 = vmatprep.subr.mxu0 0.0
      %467 = vmatpush2.msra.mxu0 0.0
      %468 = vmatprep.subr.mxu0 0.0
      %469 = vmatpush2.msra.mxu0 0.0
      %470 = vmatprep.subr.mxu0 0.0
      %471 = vmatpush2.msra.mxu0 0.0
      %472 = vmatprep.subr.mxu0 0.0
      %473 = vmatpush2.msra.mxu0 0.0
      %474 = vmatprep.mubr.f32.mxu0 0.0
      %475 = vmatmul.mubr.f32.gmra.mxu0 %v379
      %v476 = vpop.f32.mrf.mxu0
      %v477 = vadd.f32 %v408, %v476
      %v478 = vpop.f32.mrf.mxu0
      %479 = vmatprep.mubr.f32.mxu0 0.0
      %480 = vmatmul.mubr.f32.gmra.mxu0 %v380
      %v481 = vpop.f32.mrf.mxu0
      %v482 = vadd.f32 %v408, %v481
      %v483 = vpop.f32.mrf.mxu0
      %484 = vmatprep.mubr.f32.mxu0 0.0
      %485 = vmatmul.mubr.f32.gmra.mxu0 %v381
      %v486 = vpop.f32.mrf.mxu0
      %v487 = vadd.f32 %v408, %v486
      %v488 = vpop.f32.mrf.mxu0
      %489 = vmatprep.mubr.f32.mxu0 0.0
      %490 = vmatmul.mubr.f32.gmra.mxu0 %v382
      %v491 = vpop.f32.mrf.mxu0
      %v492 = vadd.f32 %v408, %v491
      %v493 = vpop.f32.mrf.mxu0
      %494 = vmatprep.mubr.f32.mxu0 0.0
      %495 = vmatmul.mubr.f32.gmra.mxu0 %v383
      %v496 = vpop.f32.mrf.mxu0
      %v497 = vadd.f32 %v408, %v496
      %v498 = vpop.f32.mrf.mxu0
      %499 = vmatprep.mubr.f32.mxu0 0.0
      %500 = vmatmul.mubr.f32.gmra.mxu0 %v384
      %v501 = vpop.f32.mrf.mxu0
      %v502 = vadd.f32 %v408, %v501
      %v503 = vpop.f32.mrf.mxu0
      %504 = vmatprep.mubr.f32.mxu0 0.0
      %505 = vmatmul.mubr.f32.gmra.mxu0 %v385
      %v506 = vpop.f32.mrf.mxu0
      %v507 = vadd.f32 %v408, %v506
      %v508 = vpop.f32.mrf.mxu0
      %509 = vmatprep.mubr.f32.mxu0 0.0
      %510 = vmatmul.mubr.f32.gmra.mxu0 %v386
      %v511 = vpop.f32.mrf.mxu0
      %v512 = vadd.f32 %v408, %v511
      %v513 = vpop.f32.mrf.mxu0
      %514 = vdwg.mxu0
      %vm515 = vcmask 15360
      %516 = vst.msk [vmem:[%s367] sm:$0xff] %vm515, %v477
      %517 = vst.msk [vmem:[%s367 + $0x8] sm:$0xff] %vm515, %v482
      %518 = vst.msk [vmem:[%s367 + $0x10] sm:$0xff] %vm515, %v487
      %519 = vst.msk [vmem:[%s367 + $0x18] sm:$0xff] %vm515, %v492
      %520 = vst.msk [vmem:[%s367 + $0x20] sm:$0xff] %vm515, %v497
      %521 = vst.msk [vmem:[%s367 + $0x28] sm:$0xff] %vm515, %v502
      %522 = vst.msk [vmem:[%s367 + $0x30] sm:$0xff] %vm515, %v507
      %523 = vst.msk [vmem:[%s367 + $0x38] sm:$0xff] %vm515, %v512
      %v524 = vsel %vm515, %v477, -inf
      %525 = vmax.xlane.f32.xlu0 %v524
      %v526 = vpop.xlane.xlu0 %525
      %v527 = vsel %vm515, %v482, -inf
      %528 = vmax.xlane.f32.xlu0 %v527
      %v529 = vpop.xlane.xlu0 %528
      %v530 = vsel %vm515, %v487, -inf
      %531 = vmax.xlane.f32.xlu0 %v530
      %v532 = vpop.xlane.xlu0 %531
      %v533 = vsel %vm515, %v492, -inf
      %534 = vmax.xlane.f32.xlu0 %v533
      %v535 = vpop.xlane.xlu0 %534
      %v536 = vsel %vm515, %v497, -inf
      %537 = vmax.xlane.f32.xlu0 %v536
      %v538 = vpop.xlane.xlu0 %537
      %v539 = vsel %vm515, %v502, -inf
      %540 = vmax.xlane.f32.xlu0 %v539
      %v541 = vpop.xlane.xlu0 %540
      %v542 = vsel %vm515, %v507, -inf
      %543 = vmax.xlane.f32.xlu0 %v542
      %v544 = vpop.xlane.xlu0 %543
      %v545 = vsel %vm515, %v512, -inf
      %546 = vmax.xlane.f32.xlu0 %v545
      %v547 = vpop.xlane.xlu0 %546
      %v548 = vsub.f32 %v477, %v526
      %v549 = vsub.f32 %v482, %v529
      %v550 = vsub.f32 %v487, %v532
      %v551 = vsub.f32 %v492, %v535
      %v552 = vsub.f32 %v497, %v538
      %v553 = vsub.f32 %v502, %v541
      %v554 = vsub.f32 %v507, %v544
      %v555 = vsub.f32 %v512, %v547
      %v556 = vmul.f32 %v548, 1.442695
      %v557 = vpow.pop %v556
      %v558 = vmul.f32 %v549, 1.442695
      %v559 = vpow.pop %v558
      %v560 = vmul.f32 %v550, 1.442695
      %v561 = vpow.pop %v560
      %v562 = vmul.f32 %v551, 1.442695
      %v563 = vpow.pop %v562
      %v564 = vmul.f32 %v552, 1.442695
      %v565 = vpow.pop %v564
      %v566 = vmul.f32 %v553, 1.442695
      %v567 = vpow.pop %v566
      %v568 = vmul.f32 %v554, 1.442695
      %v569 = vpow.pop %v568
      %v570 = vmul.f32 %v555, 1.442695
      %v571 = vpow.pop %v570
      %v572 = vsel %vm515, %v557, 0.0
      %573 = vadd.xlane.f32.xlu0 %v572
      %v574 = vpop.xlane.xlu0 %573
      %v575 = vsel %vm515, %v559, 0.0
      %576 = vadd.xlane.f32.xlu0 %v575
      %v577 = vpop.xlane.xlu0 %576
      %v578 = vsel %vm515, %v561, 0.0
      %579 = vadd.xlane.f32.xlu0 %v578
      %v580 = vpop.xlane.xlu0 %579
      %v581 = vsel %vm515, %v563, 0.0
      %582 = vadd.xlane.f32.xlu0 %v581
      %v583 = vpop.xlane.xlu0 %582
      %v584 = vsel %vm515, %v565, 0.0
      %585 = vadd.xlane.f32.xlu0 %v584
      %v586 = vpop.xlane.xlu0 %585
      %v587 = vsel %vm515, %v567, 0.0
      %588 = vadd.xlane.f32.xlu0 %v587
      %v589 = vpop.xlane.xlu0 %588
      %v590 = vsel %vm515, %v569, 0.0
      %591 = vadd.xlane.f32.xlu0 %v590
      %v592 = vpop.xlane.xlu0 %591
      %v593 = vsel %vm515, %v571, 0.0
      %594 = vadd.xlane.f32.xlu0 %v593
      %v595 = vpop.xlane.xlu0 %594
      %v596 = vlog2.pop %v574
      %v597 = vmul.f32 %v596, 0.6931472
      %v598 = vlog2.pop %v577
      %v599 = vmul.f32 %v598, 0.6931472
      %v600 = vlog2.pop %v580
      %v601 = vmul.f32 %v600, 0.6931472
      %v602 = vlog2.pop %v583
      %v603 = vmul.f32 %v602, 0.6931472
      %v604 = vlog2.pop %v586
      %v605 = vmul.f32 %v604, 0.6931472
      %v606 = vlog2.pop %v589
      %v607 = vmul.f32 %v606, 0.6931472
      %v608 = vlog2.pop %v592
      %v609 = vmul.f32 %v608, 0.6931472
      %v610 = vlog2.pop %v595
      %v611 = vmul.f32 %v610, 0.6931472
      %v612 = vld [vmem:[%s347] sm:$0xff]
      %v613 = vld [vmem:[%s347 + $0x8] sm:$0xff]
      %v614 = vld [vmem:[%s347 + $0x10] sm:$0xff]
      %v615 = vld [vmem:[%s347 + $0x18] sm:$0xff]
      %v616 = vld [vmem:[%s347 + $0x20] sm:$0xff]
      %v617 = vld [vmem:[%s347 + $0x28] sm:$0xff]
      %v618 = vld [vmem:[%s347 + $0x30] sm:$0xff]
      %v619 = vld [vmem:[%s347 + $0x38] sm:$0xff]
      %v620 = vlaneseq
      %v621 = vand.u32 %v620, 127
      %622 = vset.pattern.permute.xlu0 0
      %623 = vperm.xlu0 %622, %v612
      %v624 = vpop.permute.xlu0 %623
      %625 = vset.pattern.permute.xlu0 0
      %626 = vperm.xlu0 %625, %v613
      %v627 = vpop.permute.xlu0 %626
      %628 = vset.pattern.permute.xlu0 0
      %629 = vperm.xlu0 %628, %v614
      %v630 = vpop.permute.xlu0 %629
      %631 = vset.pattern.permute.xlu0 0
      %632 = vperm.xlu0 %631, %v615
      %v633 = vpop.permute.xlu0 %632
      %634 = vset.pattern.permute.xlu0 0
      %635 = vperm.xlu0 %634, %v616
      %v636 = vpop.permute.xlu0 %635
      %637 = vset.pattern.permute.xlu0 0
      %638 = vperm.xlu0 %637, %v617
      %v639 = vpop.permute.xlu0 %638
      %640 = vset.pattern.permute.xlu0 0
      %641 = vperm.xlu0 %640, %v618
      %v642 = vpop.permute.xlu0 %641
      %643 = vset.pattern.permute.xlu0 0
      %644 = vperm.xlu0 %643, %v619
      %v645 = vpop.permute.xlu0 %644
      %vm646 = vcmp.eq.s32.totalorder %v621, %v624
      %vm647 = vcmp.eq.s32.totalorder %v621, %v627
      %vm648 = vcmp.eq.s32.totalorder %v621, %v630
      %vm649 = vcmp.eq.s32.totalorder %v621, %v633
      %vm650 = vcmp.eq.s32.totalorder %v621, %v636
      %vm651 = vcmp.eq.s32.totalorder %v621, %v639
      %vm652 = vcmp.eq.s32.totalorder %v621, %v642
      %vm653 = vcmp.eq.s32.totalorder %v621, %v645
      %v654 = vsel %vm646, %v477, 0.0
      %v655 = vsel %vm647, %v482, 0.0
      %v656 = vsel %vm648, %v487, 0.0
      %v657 = vsel %vm649, %v492, 0.0
      %v658 = vsel %vm650, %v497, 0.0
      %v659 = vsel %vm651, %v502, 0.0
      %v660 = vsel %vm652, %v507, 0.0
      %v661 = vsel %vm653, %v512, 0.0
      %v662 = vsel %vm515, %v654, 0.0
      %663 = vadd.xlane.f32.xlu0 %v662
      %v664 = vpop.xlane.xlu0 %663
      %v665 = vsel %vm515, %v655, 0.0
      %666 = vadd.xlane.f32.xlu0 %v665
      %v667 = vpop.xlane.xlu0 %666
      %v668 = vsel %vm515, %v656, 0.0
      %669 = vadd.xlane.f32.xlu0 %v668
      %v670 = vpop.xlane.xlu0 %669
      %v671 = vsel %vm515, %v657, 0.0
      %672 = vadd.xlane.f32.xlu0 %v671
      %v673 = vpop.xlane.xlu0 %672
      %v674 = vsel %vm515, %v658, 0.0
      %675 = vadd.xlane.f32.xlu0 %v674
      %v676 = vpop.xlane.xlu0 %675
      %v677 = vsel %vm515, %v659, 0.0
      %678 = vadd.xlane.f32.xlu0 %v677
      %v679 = vpop.xlane.xlu0 %678
      %v680 = vsel %vm515, %v660, 0.0
      %681 = vadd.xlane.f32.xlu0 %v680
      %v682 = vpop.xlane.xlu0 %681
      %v683 = vsel %vm515, %v661, 0.0
      %684 = vadd.xlane.f32.xlu0 %v683
      %v685 = vpop.xlane.xlu0 %684
      %vm686 = vcmp.ne.s32.totalorder %v612, 4294967196
      %vm687 = vcmp.ne.s32.totalorder %v613, 4294967196
      %vm688 = vcmp.ne.s32.totalorder %v614, 4294967196
      %vm689 = vcmp.ne.s32.totalorder %v615, 4294967196
      %vm690 = vcmp.ne.s32.totalorder %v616, 4294967196
      %vm691 = vcmp.ne.s32.totalorder %v617, 4294967196
      %vm692 = vcmp.ne.s32.totalorder %v618, 4294967196
      %vm693 = vcmp.ne.s32.totalorder %v619, 4294967196
      %v694 = vsel %vm686, 1, 0
      %v695 = vsel %vm687, 1, 0
      %v696 = vsel %vm688, 1, 0
      %v697 = vsel %vm689, 1, 0
      %v698 = vsel %vm690, 1, 0
      %v699 = vsel %vm691, 1, 0
      %v700 = vsel %vm692, 1, 0
      %v701 = vsel %vm693, 1, 0
      %v702 = vcvt.s32.f32 %v694
      %v703 = vcvt.s32.f32 %v695
      %v704 = vcvt.s32.f32 %v696
      %v705 = vcvt.s32.f32 %v697
      %v706 = vcvt.s32.f32 %v698
      %v707 = vcvt.s32.f32 %v699
      %v708 = vcvt.s32.f32 %v700
      %v709 = vcvt.s32.f32 %v701
      %v710 = vadd.f32 %v526, %v597
      %v711 = vadd.f32 %v529, %v599
      %v712 = vadd.f32 %v532, %v601
      %v713 = vadd.f32 %v535, %v603
      %v714 = vadd.f32 %v538, %v605
      %v715 = vadd.f32 %v541, %v607
      %v716 = vadd.f32 %v544, %v609
      %v717 = vadd.f32 %v547, %v611
      %v718 = vsub.f32 %v710, %v664
      %v719 = vsub.f32 %v711, %v667
      %v720 = vsub.f32 %v712, %v670
      %v721 = vsub.f32 %v713, %v673
      %v722 = vsub.f32 %v714, %v676
      %v723 = vsub.f32 %v715, %v679
      %v724 = vsub.f32 %v716, %v682
      %v725 = vsub.f32 %v717, %v685
      %v726 = vmul.f32 %v718, %v702
      %v727 = vmul.f32 %v719, %v703
      %v728 = vmul.f32 %v720, %v704
      %v729 = vmul.f32 %v721, %v705
      %v730 = vmul.f32 %v722, %v706
      %v731 = vmul.f32 %v723, %v707
      %v732 = vmul.f32 %v724, %v708
      %v733 = vmul.f32 %v725, %v709
      %v734 = vld [vmem:[#allocation2] sm:$0x1]
      %vm735 = vcmask 7168
      %v736 = vsel %vm735, %v726, 0.0
      %v737 = vsel %vm735, %v727, 0.0
      %v738 = vadd.f32 %v736, %v737
      %v739 = vsel %vm735, %v728, 0.0
      %v740 = vadd.f32 %v738, %v739
      %v741 = vsel %vm735, %v729, 0.0
      %v742 = vadd.f32 %v740, %v741
      %v743 = vsel %vm735, %v730, 0.0
      %v744 = vadd.f32 %v742, %v743
      %v745 = vsel %vm735, %v731, 0.0
      %v746 = vadd.f32 %v744, %v745
      %v747 = vsel %vm735, %v732, 0.0
      %v748 = vadd.f32 %v746, %v747
      %v749 = vsel %vm735, %v733, 0.0
      %v750 = vadd.f32 %v748, %v749
      %v751 = vrot.slane %v750, 4
      %v752 = vadd.f32 %v750, %v751
      %v753 = vrot.slane %v752, 2
      %v754 = vadd.f32 %v752, %v753
      %v755 = vrot.slane %v754, 1
      %v756 = vadd.f32 %v754, %v755
      %v757 = vadd.f32 %v734, %v756
      %vm758 = vcmask 0
      %759 = vst.msk [vmem:[#allocation2] sm:$0x1] %vm758, %v757
      %v760 = vld [vmem:[#allocation3] sm:$0x1]
      %v761 = vld [vmem:[%s357] sm:$0xff]
      %v762 = vld [vmem:[%s357 + $0x8] sm:$0xff]
      %v763 = vld [vmem:[%s357 + $0x10] sm:$0xff]
      %v764 = vld [vmem:[%s357 + $0x18] sm:$0xff]
      %v765 = vld [vmem:[%s357 + $0x20] sm:$0xff]
      %v766 = vld [vmem:[%s357 + $0x28] sm:$0xff]
      %v767 = vld [vmem:[%s357 + $0x30] sm:$0xff]
      %v768 = vld [vmem:[%s357 + $0x38] sm:$0xff]
      %v769 = vsel %vm735, %v761, 0.0
      %v770 = vsel %vm735, %v762, 0.0
      %v771 = vadd.f32 %v769, %v770
      %v772 = vsel %vm735, %v763, 0.0
      %v773 = vadd.f32 %v771, %v772
      %v774 = vsel %vm735, %v764, 0.0
      %v775 = vadd.f32 %v773, %v774
      %v776 = vsel %vm735, %v765, 0.0
      %v777 = vadd.f32 %v775, %v776
      %v778 = vsel %vm735, %v766, 0.0
      %v779 = vadd.f32 %v777, %v778
      %v780 = vsel %vm735, %v767, 0.0
      %v781 = vadd.f32 %v779, %v780
      %v782 = vsel %vm735, %v768, 0.0
      %v783 = vadd.f32 %v781, %v782
      %v784 = vrot.slane %v783, 4
      %v785 = vadd.f32 %v783, %v784
      %v786 = vrot.slane %v785, 2
      %v787 = vadd.f32 %v785, %v786
      %v788 = vrot.slane %v787, 1
      %v789 = vadd.f32 %v787, %v788
      %v790 = vadd.f32 %v760, %v789
      %791 = vst.msk [vmem:[#allocation3] sm:$0x1] %vm758, %v790
      %p792 = scmp.eq.s32.totalorder %s23, 3
      // Predicated region
      $region45: #{tpu_custom_call.1} parent=39 // pred_check
        %p793 = pneg %p792
      $region46: #{tpu_custom_call.1} parent=39 // pred_check_branch
        %795 = sbr.rel (%p793) target = $region48
      $region47: #{tpu_custom_call.1} parent=39 // pred_region
        %v796 = vld [vmem:[#allocation2] sm:$0x1]
        %v797 = vld [vmem:[#allocation3] sm:$0x1]
        %v798 = vrcp.pop %v797
        %v799 = vmul.f32 %v796, %v798
        %800 = vst.msk [vmem:[%s371] sm:$0x1] %vm758, %v799
      $region48: #{tpu_custom_call.1} parent=39 // pred_fallthru
        _
      %s801 = smul.u32 8, %s23
      %p802 = scmp.lt.s32.totalorder %s22, 1
      %s803 = scalar_select %p802, %s22, 1
      %p804 = scmp.lt.s32.totalorder %s801, 31
      %s805 = scalar_select %p804, %s801, 31
      %s806 = smul.addr %s803, 32
      %s807 = sadd.s32 %s805, %s806
      %s808 = smul.addr %s807, 8
      %s809 = scalar_lea.vmem %s5, %s808
      %p810 = scmp.lt.s32.totalorder %s22, 1
      %s811 = scalar_select %p810, %s22, 1
      %s812 = scalar_lea.vmem %s6, %s811
      // Predicated region
      $region49: #{tpu_custom_call.1} parent=39 // pred_check
        %p813 = pneg %p176
      $region50: #{tpu_custom_call.1} parent=39 // pred_check_branch
        %815 = sbr.rel (%p813) target = $region52
      $region51: #{tpu_custom_call.1} parent=39 // pred_region
        %s816 = smul.u32 8, %s23
      $region52: #{tpu_custom_call.1} parent=39 // pred_fallthru
        _
      // Predicated region
      $region53: #{tpu_custom_call.1} parent=39 // pred_check
        %p817 = pneg %p202
      $region54: #{tpu_custom_call.1} parent=39 // pred_check_branch
        %819 = sbr.rel (%p817) target = $region56
      $region55: #{tpu_custom_call.1} parent=39 // pred_region
        _
      $region56: #{tpu_custom_call.1} parent=39 // pred_fallthru
        _
    $region40: #{tpu_custom_call.1} parent=5 // pred_fallthru
      _
    %p820 = scmp.le.s32.totalorder 2, %s13
    // Predicated region
    $region57: #{tpu_custom_call.1} parent=5 // pred_check
      %p821 = pneg %p820
    $region58: #{tpu_custom_call.1} parent=5 // pred_check_branch
      %823 = sbr.rel (%p821) target = $region60
    $region59: #{tpu_custom_call.1} parent=5 // pred_region
      %s824 = ssub.s32 %s13, 2
      // Predicated region
      $region61: #{tpu_custom_call.1} parent=59 // pred_check
        %p825 = pneg %p182
      $region62: #{tpu_custom_call.1} parent=59 // pred_check_branch
        %827 = sbr.rel (%p825) target = $region64
      $region63: #{tpu_custom_call.1} parent=59 // pred_region
        %s828 = smul.u32 8, %s25
        %p829 = scmp.lt.s32.totalorder %s24, 1
        %s830 = scalar_select %p829, %s24, 1
        %p831 = scmp.lt.s32.totalorder %s828, 31
        %s832 = scalar_select %p831, %s828, 31
        %s833 = smul.addr %s830, 32
        %s834 = sadd.s32 %s832, %s833
        %s835 = smul.addr %s834, 8
        %s836 = scalar_lea.vmem %s5, %s835
      $region64: #{tpu_custom_call.1} parent=59 // pred_fallthru
        _
      // Predicated region
      $region65: #{tpu_custom_call.1} parent=59 // pred_check
        %p837 = pneg %p208
      $region66: #{tpu_custom_call.1} parent=59 // pred_check_branch
        %839 = sbr.rel (%p837) target = $region68
      $region67: #{tpu_custom_call.1} parent=59 // pred_region
        %p840 = scmp.lt.s32.totalorder %s24, 1
        %s841 = scalar_select %p840, %s24, 1
        %s842 = scalar_lea.vmem %s6, %s841
      $region68: #{tpu_custom_call.1} parent=59 // pred_fallthru
        _
    $region60: #{tpu_custom_call.1} parent=5 // pred_fallthru
      _
  $region6: #{tpu_custom_call.1} parent=0 // loop_footer
    %s17 = sadd.s32 1, %s13
  $region7: #{tpu_custom_call.1} parent=0 // loop_footer_branch
    %12 = sbr.rel target = $region3
  $region8: #{tpu_custom_call.1} parent=0 // loop_exit
    _

</llo_original>
